<compile_context>
chip_gen: v7x
topology: tpu7x:2x2x1
jax: 0.10.0
libtpu: 0.0.40
codegen_flags: <defaults>
</compile_context>

<pallas_src>
import jax
import jax.numpy as jnp
from jax.experimental import pallas as pl
from jax.experimental.pallas import tpu as pltpu


def _round_up(v, m):
    return ((v + m - 1) // m) * m


def _mlp_kernel(x_ref, w1_ref, w23_ref, b_ref, o_ref):
    # Fused Linear->ReLU->Linear->ReLU->Linear on one VMEM-resident batch tile.
    # x_ref:   (TB, INp)   bf16
    # w1_ref:  (INp, Hp)   bf16
    # w23_ref: (Hp, 2*Hp)  bf16   [:, :Hp] = w2, [:, Hp:] = w3
    # b_ref:   (8, Hp)     f32    rows 0/1/2 = b1/b2/b3
    # o_ref:   (TB, Hp)    f32    (true n_actions columns sliced out in wrapper)
    H = w1_ref.shape[1]
    x = x_ref[...]
    h1 = jnp.dot(x, w1_ref[...], preferred_element_type=jnp.float32) + b_ref[0:1, :]
    h1 = jnp.maximum(h1, 0.0).astype(x.dtype)
    h2 = jnp.dot(h1, w23_ref[:, :H], preferred_element_type=jnp.float32) + b_ref[1:2, :]
    h2 = jnp.maximum(h2, 0.0).astype(x.dtype)
    o_ref[...] = jnp.dot(h2, w23_ref[:, H:], preferred_element_type=jnp.float32) + b_ref[2:3, :]


def init_params(key, n_obs, n_act, hidden=24):
    """Deterministic init mimicking nn.Linear's uniform(-1/sqrt(fan_in), 1/sqrt(fan_in))."""
    ks = jax.random.split(key, 6)

    def lin(kw, kb, fan_in, fan_out):
        bound = 1.0 / jnp.sqrt(jnp.float32(fan_in))
        w = jax.random.uniform(kw, (fan_in, fan_out), jnp.float32, -bound, bound)
        b = jax.random.uniform(kb, (fan_out,), jnp.float32, -bound, bound)
        return w, b

    w1, b1 = lin(ks[0], ks[1], n_obs, hidden)
    w2, b2 = lin(ks[2], ks[3], hidden, hidden)
    w3, b3 = lin(ks[4], ks[5], hidden, n_act)
    return {"w1": w1, "b1": b1, "w2": w2, "b2": b2, "w3": w3, "b3": b3}


def prepare_params(params, compute_dtype=jnp.bfloat16):
    """Pad + pack parameters ONCE (outside the per-step hot path).

    Returns padded/packed arrays:
      w1p  : (INp, 128)  compute_dtype
      w23p : (128, 256)  compute_dtype   (w2 | w3, lane-concatenated)
      bp   : (8, 128)    f32             (rows 0..2 = b1, b2, b3)
    """
    w1, b1 = params["w1"], params["b1"]
    w2, b2 = params["w2"], params["b2"]
    w3, b3 = params["w3"], params["b3"]
    n_obs, hidden = w1.shape
    n_act = w3.shape[1]
    assert hidden <= 128 and n_act <= 128, "packed-slab layout assumes hidden/n_act <= 128"

    INp = _round_up(max(n_obs, 128), 128)
    Hp = 128

    w1p = jnp.zeros((INp, Hp), compute_dtype).at[:n_obs, :hidden].set(w1.astype(compute_dtype))
    w23p = (
        jnp.zeros((Hp, 2 * Hp), compute_dtype)
        .at[:hidden, :hidden].set(w2.astype(compute_dtype))
        .at[:hidden, Hp:Hp + n_act].set(w3.astype(compute_dtype))
    )
    bp = (
        jnp.zeros((8, Hp), jnp.float32)
        .at[0, :hidden].set(b1)
        .at[1, :hidden].set(b2)
        .at[2, :n_act].set(b3)
    )
    return {
        "w1p": w1p, "w23p": w23p, "bp": bp,
        "n_obs": n_obs, "n_act": n_act,
        "INp": INp, "Hp": Hp, "dtype": compute_dtype,
    }


def _dqn_forward_impl(x, prep, *, tile_batch=512):
    """x: (B, n_obs) float32. prep: output of prepare_params (padded/packed weights)."""
    B, n_obs = x.shape
    assert n_obs == prep["n_obs"]
    INp, Hp, dtype = prep["INp"], prep["Hp"], prep["dtype"]
    n_act = prep["n_act"]

    # Batch tiling: one block for tiny per-step inference, gridded (parallel) for
    # big replay-buffer batches so both TCs on v7x are used and VMEM stays bounded.
    Bp_raw = _round_up(max(B, 8), 8)
    TB = min(tile_batch, Bp_raw)
    Bp = _round_up(Bp_raw, TB)

    # Only the activation is padded per call (single op); weights were padded at init.
    xp = jnp.zeros((Bp, INp), dtype).at[:B, :n_obs].set(x.astype(dtype))

    flops = 2 * Bp * (INp * Hp + Hp * Hp + Hp * Hp)
    bytes_accessed = (
        Bp * INp * jnp.dtype(dtype).itemsize
        + prep["w1p"].size * prep["w1p"].dtype.itemsize
        + prep["w23p"].size * prep["w23p"].dtype.itemsize
        + prep["bp"].size * prep["bp"].dtype.itemsize
        + Bp * Hp * 4
    )

    out_padded = pl.pallas_call(
        _mlp_kernel,
        out_shape=jax.ShapeDtypeStruct((Bp, Hp), jnp.float32),
        grid_spec=pltpu.PrefetchScalarGridSpec(
            num_scalar_prefetch=0,
            grid=(Bp // TB,),
            in_specs=[
                pl.BlockSpec((TB, INp), lambda i: (i, 0)),       # x: tiled over batch
                pl.BlockSpec((INp, Hp), lambda i: (0, 0)),       # w1: block-invariant
                pl.BlockSpec((Hp, 2 * Hp), lambda i: (0, 0)),    # w2|w3 slab
                pl.BlockSpec((8, Hp), lambda i: (0, 0)),         # packed biases
            ],
            out_specs=pl.BlockSpec((TB, Hp), lambda i: (i, 0)),
        ),
        compiler_params=pltpu.CompilerParams(dimension_semantics=("parallel",)),
        cost_estimate=pl.CostEstimate(
            flops=flops, transcendentals=0, bytes_accessed=int(bytes_accessed)),
    )(xp, prep["w1p"], prep["w23p"], prep["bp"])

    return out_padded[:B, :n_act]


def make_dqn_forward(prep, *, tile_batch=512):
    """Return a jit-compiled forward closure over the packed weights.

    The activation pad, pallas_call, and final slice fuse into one XLA program
    per batch shape, so per-step inference has a single dispatch.
    """
    @jax.jit
    def fwd(x):
        return _dqn_forward_impl(x, prep, tile_batch=tile_batch)
    return fwd


if __name__ == "__main__":
    # CartPole-like env: observation_space.shape[0] = 4, action_space.n = 2
    n_obs, n_act, batch = 4, 2, 2

    key = jax.random.PRNGKey(0)
    kx, kp, kx2 = jax.random.split(key, 3)
    params = init_params(kp, n_obs, n_act)
    prep = prepare_params(params)          # pad/pack weights ONCE, outside hot path
    dqn_forward = make_dqn_forward(prep)   # jitted hot-path forward

    def ref_fwd(xin):
        h1 = jnp.maximum(xin @ params["w1"] + params["b1"], 0.0)
        h2 = jnp.maximum(h1 @ params["w2"] + params["b2"], 0.0)
        return h2 @ params["w3"] + params["b3"]

    # Per-step inference-sized call (single grid block).
    x = jax.random.normal(kx, (batch, n_obs), jnp.float32)
    out = jax.block_until_ready(dqn_forward(x))
    ref = ref_fwd(x)
    assert out.shape == (batch, n_act)
    assert jnp.allclose(out, ref, atol=3e-2, rtol=3e-2)  # bf16 weights/activations

    # Replay-buffer-sized call exercises the parallel batch grid (grid=(2,)).
    x_big = jax.random.normal(kx2, (1024, n_obs), jnp.float32)
    out_big = jax.block_until_ready(dqn_forward(x_big))
    ref_big = ref_fwd(x_big)
    assert out_big.shape == (1024, n_act)
    assert jnp.allclose(out_big, ref_big, atol=3e-2, rtol=3e-2)

    print("KERNEL_OK")
</pallas_src>

<mosaic_0001>
module attributes {stable_mosaic.version = 11 : i64} {
  func.func @_mlp_kernel(%arg0: i32, %arg1: memref<8x128xbf16, #tpu.memory_space<vmem>>, %arg2: memref<128x128xbf16, #tpu.memory_space<vmem>>, %arg3: memref<128x256xbf16, #tpu.memory_space<vmem>>, %arg4: memref<8x128xf32, #tpu.memory_space<vmem>>, %arg5: memref<8x128xf32, #tpu.memory_space<vmem>>) attributes {dimension_semantics = [#tpu.dimension_semantics<parallel>], iteration_bounds = array<i64: 1>, scalar_prefetch = 0 : i64, scratch_operands = 0 : i64, tpu.core_type = #tpu.core_type<tc>, window_params = [{transform_indices = @transform_0, window_bounds = array<i64: 8, 128>}, {pipeline_mode = #tpu.pipeline_mode<synchronous>, transform_indices = @transform_1, window_bounds = array<i64: 128, 128>}, {pipeline_mode = #tpu.pipeline_mode<synchronous>, transform_indices = @transform_2, window_bounds = array<i64: 128, 256>}, {pipeline_mode = #tpu.pipeline_mode<synchronous>, transform_indices = @transform_3, window_bounds = array<i64: 8, 128>}, {transform_indices = @transform_4, window_bounds = array<i64: 8, 128>}]} {
    %c0 = arith.constant 0 : index
    %c0_0 = arith.constant 0 : index
    %0 = vector.load %arg1[%c0, %c0_0] : memref<8x128xbf16, #tpu.memory_space<vmem>>, vector<8x128xbf16>
    %c0_1 = arith.constant 0 : index
    %c0_2 = arith.constant 0 : index
    %1 = vector.load %arg2[%c0_1, %c0_2] : memref<128x128xbf16, #tpu.memory_space<vmem>>, vector<128x128xbf16>
    %cst = arith.constant dense<0.000000e+00> : vector<8x128xf32>
    %2 = tpu.matmul %0, %1, %cst {dimension_numbers = #tpu.dot_dimension_numbers<[1], [0], [0], [1], [0, 0, 1, 1], [], []>} : vector<8x128xbf16>, vector<128x128xbf16>, vector<8x128xf32> -> vector<8x128xf32>
    %c0_3 = arith.constant 0 : index
    %c0_4 = arith.constant 0 : index
    %3 = vector.load %arg4[%c0_3, %c0_4] : memref<8x128xf32, #tpu.memory_space<vmem>>, vector<1x128xf32>
    %4 = vector.broadcast %3 : vector<1x128xf32> to vector<8x128xf32>
    %5 = arith.addf %2, %4 : vector<8x128xf32>
    %cst_5 = arith.constant 0.000000e+00 : f32
    %6 = vector.broadcast %cst_5 : f32 to vector<8x128xf32>
    %7 = arith.maximumf %5, %6 : vector<8x128xf32>
    %8 = arith.truncf %7 : vector<8x128xf32> to vector<8x128xbf16>
    %c0_6 = arith.constant 0 : index
    %c0_7 = arith.constant 0 : index
    %9 = vector.load %arg3[%c0_6, %c0_7] : memref<128x256xbf16, #tpu.memory_space<vmem>>, vector<128x128xbf16>
    %cst_8 = arith.constant dense<0.000000e+00> : vector<8x128xf32>
    %10 = tpu.matmul %8, %9, %cst_8 {dimension_numbers = #tpu.dot_dimension_numbers<[1], [0], [0], [1], [0, 0, 1, 1], [], []>} : vector<8x128xbf16>, vector<128x128xbf16>, vector<8x128xf32> -> vector<8x128xf32>
    %c1 = arith.constant 1 : index
    %c0_9 = arith.constant 0 : index
    %11 = vector.load %arg4[%c1, %c0_9] : memref<8x128xf32, #tpu.memory_space<vmem>>, vector<1x128xf32>
    %12 = vector.broadcast %11 : vector<1x128xf32> to vector<8x128xf32>
    %13 = arith.addf %10, %12 : vector<8x128xf32>
    %cst_10 = arith.constant 0.000000e+00 : f32
    %14 = vector.broadcast %cst_10 : f32 to vector<8x128xf32>
    %15 = arith.maximumf %13, %14 : vector<8x128xf32>
    %16 = arith.truncf %15 : vector<8x128xf32> to vector<8x128xbf16>
    %c0_11 = arith.constant 0 : index
    %c128 = arith.constant 128 : index
    %17 = vector.load %arg3[%c0_11, %c128] : memref<128x256xbf16, #tpu.memory_space<vmem>>, vector<128x128xbf16>
    %cst_12 = arith.constant dense<0.000000e+00> : vector<8x128xf32>
    %18 = tpu.matmul %16, %17, %cst_12 {dimension_numbers = #tpu.dot_dimension_numbers<[1], [0], [0], [1], [0, 0, 1, 1], [], []>} : vector<8x128xbf16>, vector<128x128xbf16>, vector<8x128xf32> -> vector<8x128xf32>
    %c2 = arith.constant 2 : index
    %c0_13 = arith.constant 0 : index
    %19 = vector.load %arg4[%c2, %c0_13] : memref<8x128xf32, #tpu.memory_space<vmem>>, vector<1x128xf32>
    %20 = vector.broadcast %19 : vector<1x128xf32> to vector<8x128xf32>
    %21 = arith.addf %18, %20 : vector<8x128xf32>
    %c0_14 = arith.constant 0 : index
    %c0_15 = arith.constant 0 : index
    %22 = vector.load %arg5[%c0_14, %c0_15] : memref<8x128xf32, #tpu.memory_space<vmem>>, vector<8x128xf32>
    tpu.vector_store %arg5[%c0_14, %c0_15], %21 {strides = array<i32>} : memref<8x128xf32, #tpu.memory_space<vmem>>, vector<8x128xf32>,
    return
  }
  func.func @transform_0(%arg0: i32) -> (i32, i32) {
    %c0_i32 = arith.constant 0 : i32
    %c0_i32_0 = arith.constant 0 : i32
    return %arg0, %c0_i32 : i32, i32
  }
  func.func @transform_1(%arg0: i32) -> (i32, i32) {
    %c0_i32 = arith.constant 0 : i32
    %c0_i32_0 = arith.constant 0 : i32
    %c0_i32_1 = arith.constant 0 : i32
    return %c0_i32, %c0_i32_0 : i32, i32
  }
  func.func @transform_2(%arg0: i32) -> (i32, i32) {
    %c0_i32 = arith.constant 0 : i32
    %c0_i32_0 = arith.constant 0 : i32
    %c0_i32_1 = arith.constant 0 : i32
    return %c0_i32, %c0_i32_0 : i32, i32
  }
  func.func @transform_3(%arg0: i32) -> (i32, i32) {
    %c0_i32 = arith.constant 0 : i32
    %c0_i32_0 = arith.constant 0 : i32
    %c0_i32_1 = arith.constant 0 : i32
    return %c0_i32, %c0_i32_0 : i32, i32
  }
  func.func @transform_4(%arg0: i32) -> (i32, i32) {
    %c0_i32 = arith.constant 0 : i32
    %c0_i32_0 = arith.constant 0 : i32
    return %arg0, %c0_i32 : i32, i32
  }
}

</mosaic_0001>

<llo_original>
// kernel: fwd.1
$region0: #{fwd.1}
  #allocation0 [shape = 'u32[]', space=smem, size = 0x4, offset = 0x4, fixed_abs, tag = 'smem constant byte address 0x4 - core index']
  #allocation1 [shape = 'u32[144,128]{1,0:T(1,128)}', space=vmem, size = 0x12000, scoped, tag = 'internal scratch']
  %s0 = inlined_call_operand.vmem [shape: bf16[8,128], index: 0, kind: input, shape index: {}]
  %s1 = inlined_call_operand.vmem [shape: bf16[128,128], index: 1, kind: input, shape index: {}]
  %s2 = inlined_call_operand.vmem [shape: bf16[128,256], index: 2, kind: input, shape index: {}]
  %s3 = inlined_call_operand.vmem [shape: f32[8,128], index: 3, kind: input, shape index: {}]
  %s4 = inlined_call_operand.vmem [shape: f32[8,128], index: 4, kind: output, shape index: {}]
  %s5 = sld [smem:[#allocation0]]
  $region26: #{fwd.1} parent=0
    _
  %s7 = ssub.s32 1, %s5
  %s8 = scalar_select 0, %s7, %s5
  // Predicated region
  $region2: #{fwd.1} parent=0 // pred_check
    _
  $region3: #{fwd.1} parent=0 // pred_check_branch
    %10 = sbr.rel (0) target = $region5
  $region4: #{fwd.1} parent=0 // pred_region
    _
  $region5: #{fwd.1} parent=0 // pred_fallthru
    _
  // Predicated region
  $region6: #{fwd.1} parent=0 // pred_check
    _
  $region7: #{fwd.1} parent=0 // pred_check_branch
    %12 = sbr.rel (0) target = $region9
  $region8: #{fwd.1} parent=0 // pred_region
    _
  $region9: #{fwd.1} parent=0 // pred_fallthru
    _
  // Predicated region
  $region10: #{fwd.1} parent=0 // pred_check
    _
  $region11: #{fwd.1} parent=0 // pred_check_branch
    %14 = sbr.rel (0) target = $region13
  $region12: #{fwd.1} parent=0 // pred_region
    _
  $region13: #{fwd.1} parent=0 // pred_fallthru
    _
  // Predicated region
  $region14: #{fwd.1} parent=0 // pred_check
    _
  $region15: #{fwd.1} parent=0 // pred_check_branch
    %16 = sbr.rel (0) target = $region17
  $region16: #{fwd.1} parent=0 // pred_region
    _
  $region17: #{fwd.1} parent=0 // pred_fallthru
    _
  %v18 = vld [vmem:[%s0] sm:$0xf]
  %v19 = vld [vmem:[%s1] sm:$0xf]
  %v20 = vld [vmem:[%s1 + $0x4] sm:$0xf]
  %v21 = vld [vmem:[%s1 + $0x8] sm:$0xf]
  %v22 = vld [vmem:[%s1 + $0xc] sm:$0xf]
  %v23 = vld [vmem:[%s1 + $0x10] sm:$0xf]
  %v24 = vld [vmem:[%s1 + $0x14] sm:$0xf]
  %v25 = vld [vmem:[%s1 + $0x18] sm:$0xf]
  %v26 = vld [vmem:[%s1 + $0x1c] sm:$0xf]
  %v27 = vld [vmem:[%s1 + $0x20] sm:$0xf]
  %v28 = vld [vmem:[%s1 + $0x24] sm:$0xf]
  %v29 = vld [vmem:[%s1 + $0x28] sm:$0xf]
  %v30 = vld [vmem:[%s1 + $0x2c] sm:$0xf]
  %v31 = vld [vmem:[%s1 + $0x30] sm:$0xf]
  %v32 = vld [vmem:[%s1 + $0x34] sm:$0xf]
  %v33 = vld [vmem:[%s1 + $0x38] sm:$0xf]
  %v34 = vld [vmem:[%s1 + $0x3c] sm:$0xf]
  %v35 = vld [vmem:[%s3] sm:$0x1]
  %v36 = vlaneseq
  %v37 = vshrl.u32 %v36, 7
  %v38 = vsub.s32 0, %v37
  %v39 = vrot.slane %v35, %v38
  %v56 = vunpack.c.l.b16 %v19
  %v57 = vunpack.c.l.b16 %v20
  %v58 = vunpack.c.l.b16 %v21
  %v59 = vunpack.c.l.b16 %v22
  %v60 = vunpack.c.l.b16 %v23
  %v61 = vunpack.c.l.b16 %v24
  %v62 = vunpack.c.l.b16 %v25
  %v63 = vunpack.c.l.b16 %v26
  %v64 = vunpack.c.l.b16 %v27
  %v65 = vunpack.c.l.b16 %v28
  %v66 = vunpack.c.l.b16 %v29
  %v67 = vunpack.c.l.b16 %v30
  %v68 = vunpack.c.l.b16 %v31
  %v69 = vunpack.c.l.b16 %v32
  %v70 = vunpack.c.l.b16 %v33
  %v71 = vunpack.c.l.b16 %v34
  %v72 = vpack.c.b16 %v57, %v56
  %v73 = vpack.c.b16 %v59, %v58
  %v74 = vpack.c.b16 %v61, %v60
  %v75 = vpack.c.b16 %v63, %v62
  %v76 = vpack.c.b16 %v65, %v64
  %v77 = vpack.c.b16 %v67, %v66
  %v78 = vpack.c.b16 %v69, %v68
  %v79 = vpack.c.b16 %v71, %v70
  %88 = vmatprep.subr.bf16.mxu0 0
  %89 = vmatpush1.bf16.msra.mxu0 %v72
  %90 = vmatprep.subr.bf16.mxu0 0
  %91 = vmatpush1.bf16.msra.mxu0 %v73
  %92 = vmatprep.subr.bf16.mxu0 0
  %93 = vmatpush1.bf16.msra.mxu0 %v74
  %94 = vmatprep.subr.bf16.mxu0 0
  %95 = vmatpush1.bf16.msra.mxu0 %v75
  %96 = vmatprep.subr.bf16.mxu0 0
  %97 = vmatpush1.bf16.msra.mxu0 %v76
  %98 = vmatprep.subr.bf16.mxu0 0
  %99 = vmatpush1.bf16.msra.mxu0 %v77
  %100 = vmatprep.subr.bf16.mxu0 0
  %101 = vmatpush1.bf16.msra.mxu0 %v78
  %102 = vmatprep.subr.bf16.mxu0 0
  %103 = vmatpush1.bf16.msra.mxu0 %v79
  %104 = vmatprep.subr.bf16.mxu0 0
  %105 = vmatpush1.bf16.msra.mxu0 0
  %106 = vmatprep.subr.bf16.mxu0 0
  %107 = vmatpush1.bf16.msra.mxu0 0
  %108 = vmatprep.subr.bf16.mxu0 0
  %109 = vmatpush1.bf16.msra.mxu0 0
  %110 = vmatprep.subr.bf16.mxu0 0
  %111 = vmatpush1.bf16.msra.mxu0 0
  %112 = vmatprep.subr.bf16.mxu0 0
  %113 = vmatpush1.bf16.msra.mxu0 0
  %114 = vmatprep.subr.bf16.mxu0 0
  %115 = vmatpush1.bf16.msra.mxu0 0
  %116 = vmatprep.subr.bf16.mxu0 0
  %117 = vmatpush1.bf16.msra.mxu0 0
  %118 = vmatprep.subr.bf16.mxu0 0
  %119 = vmatpush1.bf16.msra.mxu0 0
  %120 = vmatprep.mubr.bf16.mxu0 0
  %121 = vmatmul.mubr.bf16.gmra.mrb[0].mxu0 %v18
  %v122 = vpop.f32.mrb[0].mxu0
  %v123 = vadd.f32 %v39, %v122
  %v124 = vpop.f32.mrb[0].mxu0
  %v125 = vpop.f32.mrb[0].mxu0
  %v126 = vpop.f32.mrb[0].mxu0
  %127 = vdwg.mxu0
  %v128 = vmax.f32 %v123, 0.0
  %v129 = vpack.c.bf16 %v128, %v128
  %v130 = vld [vmem:[%s2] sm:$0xf]
  %v131 = vld [vmem:[%s2 + $0x8] sm:$0xf]
  %v132 = vld [vmem:[%s2 + $0x10] sm:$0xf]
  %v133 = vld [vmem:[%s2 + $0x18] sm:$0xf]
  %v134 = vld [vmem:[%s2 + $0x20] sm:$0xf]
  %v135 = vld [vmem:[%s2 + $0x28] sm:$0xf]
  %v136 = vld [vmem:[%s2 + $0x30] sm:$0xf]
  %v137 = vld [vmem:[%s2 + $0x38] sm:$0xf]
  %v138 = vld [vmem:[%s2 + $0x40] sm:$0xf]
  %v139 = vld [vmem:[%s2 + $0x48] sm:$0xf]
  %v140 = vld [vmem:[%s2 + $0x50] sm:$0xf]
  %v141 = vld [vmem:[%s2 + $0x58] sm:$0xf]
  %v142 = vld [vmem:[%s2 + $0x60] sm:$0xf]
  %v143 = vld [vmem:[%s2 + $0x68] sm:$0xf]
  %v144 = vld [vmem:[%s2 + $0x70] sm:$0xf]
  %v145 = vld [vmem:[%s2 + $0x78] sm:$0xf]
  %v146 = vld [vmem:[%s3 + $0x1] sm:$0x1]
  %v147 = vlaneseq
  %v148 = vshrl.u32 %v147, 7
  %v149 = vsub.s32 0, %v148
  %v150 = vrot.slane %v146, %v149
  %v167 = vunpack.c.l.b16 %v130
  %v168 = vunpack.c.l.b16 %v131
  %v169 = vunpack.c.l.b16 %v132
  %v170 = vunpack.c.l.b16 %v133
  %v171 = vunpack.c.l.b16 %v134
  %v172 = vunpack.c.l.b16 %v135
  %v173 = vunpack.c.l.b16 %v136
  %v174 = vunpack.c.l.b16 %v137
  %v175 = vunpack.c.l.b16 %v138
  %v176 = vunpack.c.l.b16 %v139
  %v177 = vunpack.c.l.b16 %v140
  %v178 = vunpack.c.l.b16 %v141
  %v179 = vunpack.c.l.b16 %v142
  %v180 = vunpack.c.l.b16 %v143
  %v181 = vunpack.c.l.b16 %v144
  %v182 = vunpack.c.l.b16 %v145
  %v183 = vpack.c.b16 %v168, %v167
  %v184 = vpack.c.b16 %v170, %v169
  %v185 = vpack.c.b16 %v172, %v171
  %v186 = vpack.c.b16 %v174, %v173
  %v187 = vpack.c.b16 %v176, %v175
  %v188 = vpack.c.b16 %v178, %v177
  %v189 = vpack.c.b16 %v180, %v179
  %v190 = vpack.c.b16 %v182, %v181
  %199 = vmatprep.subr.bf16.mxu0 0
  %200 = vmatpush1.bf16.msra.mxu0 %v183
  %201 = vmatprep.subr.bf16.mxu0 0
  %202 = vmatpush1.bf16.msra.mxu0 %v184
  %203 = vmatprep.subr.bf16.mxu0 0
  %204 = vmatpush1.bf16.msra.mxu0 %v185
  %205 = vmatprep.subr.bf16.mxu0 0
  %206 = vmatpush1.bf16.msra.mxu0 %v186
  %207 = vmatprep.subr.bf16.mxu0 0
  %208 = vmatpush1.bf16.msra.mxu0 %v187
  %209 = vmatprep.subr.bf16.mxu0 0
  %210 = vmatpush1.bf16.msra.mxu0 %v188
  %211 = vmatprep.subr.bf16.mxu0 0
  %212 = vmatpush1.bf16.msra.mxu0 %v189
  %213 = vmatprep.subr.bf16.mxu0 0
  %214 = vmatpush1.bf16.msra.mxu0 %v190
  %215 = vmatprep.subr.bf16.mxu0 0
  %216 = vmatpush1.bf16.msra.mxu0 0
  %217 = vmatprep.subr.bf16.mxu0 0
  %218 = vmatpush1.bf16.msra.mxu0 0
  %219 = vmatprep.subr.bf16.mxu0 0
  %220 = vmatpush1.bf16.msra.mxu0 0
  %221 = vmatprep.subr.bf16.mxu0 0
  %222 = vmatpush1.bf16.msra.mxu0 0
  %223 = vmatprep.subr.bf16.mxu0 0
  %224 = vmatpush1.bf16.msra.mxu0 0
  %225 = vmatprep.subr.bf16.mxu0 0
  %226 = vmatpush1.bf16.msra.mxu0 0
  %227 = vmatprep.subr.bf16.mxu0 0
  %228 = vmatpush1.bf16.msra.mxu0 0
  %229 = vmatprep.subr.bf16.mxu0 0
  %230 = vmatpush1.bf16.msra.mxu0 0
  %231 = vmatprep.mubr.bf16.mxu0 0
  %232 = vmatmul.mubr.bf16.gmra.mrb[0].mxu0 %v129
  %v233 = vpop.f32.mrb[0].mxu0
  %v234 = vadd.f32 %v150, %v233
  %v235 = vpop.f32.mrb[0].mxu0
  %v236 = vpop.f32.mrb[0].mxu0
  %v237 = vpop.f32.mrb[0].mxu0
  %238 = vdwg.mxu0
  %v239 = vmax.f32 %v234, 0.0
  %v240 = vpack.c.bf16 %v239, %v239
  %v241 = vld [vmem:[%s2 + $0x4] sm:$0xf]
  %v242 = vld [vmem:[%s2 + $0xc] sm:$0xf]
  %v243 = vld [vmem:[%s2 + $0x14] sm:$0xf]
  %v244 = vld [vmem:[%s2 + $0x1c] sm:$0xf]
  %v245 = vld [vmem:[%s2 + $0x24] sm:$0xf]
  %v246 = vld [vmem:[%s2 + $0x2c] sm:$0xf]
  %v247 = vld [vmem:[%s2 + $0x34] sm:$0xf]
  %v248 = vld [vmem:[%s2 + $0x3c] sm:$0xf]
  %v249 = vld [vmem:[%s2 + $0x44] sm:$0xf]
  %v250 = vld [vmem:[%s2 + $0x4c] sm:$0xf]
  %v251 = vld [vmem:[%s2 + $0x54] sm:$0xf]
  %v252 = vld [vmem:[%s2 + $0x5c] sm:$0xf]
  %v253 = vld [vmem:[%s2 + $0x64] sm:$0xf]
  %v254 = vld [vmem:[%s2 + $0x6c] sm:$0xf]
  %v255 = vld [vmem:[%s2 + $0x74] sm:$0xf]
  %v256 = vld [vmem:[%s2 + $0x7c] sm:$0xf]
  %v257 = vld [vmem:[%s3 + $0x2] sm:$0x1]
  %v258 = vlaneseq
  %v259 = vshrl.u32 %v258, 7
  %v260 = vsub.s32 0, %v259
  %v261 = vrot.slane %v257, %v260
  %v278 = vunpack.c.l.b16 %v241
  %v279 = vunpack.c.l.b16 %v242
  %v280 = vunpack.c.l.b16 %v243
  %v281 = vunpack.c.l.b16 %v244
  %v282 = vunpack.c.l.b16 %v245
  %v283 = vunpack.c.l.b16 %v246
  %v284 = vunpack.c.l.b16 %v247
  %v285 = vunpack.c.l.b16 %v248
  %v286 = vunpack.c.l.b16 %v249
  %v287 = vunpack.c.l.b16 %v250
  %v288 = vunpack.c.l.b16 %v251
  %v289 = vunpack.c.l.b16 %v252
  %v290 = vunpack.c.l.b16 %v253
  %v291 = vunpack.c.l.b16 %v254
  %v292 = vunpack.c.l.b16 %v255
  %v293 = vunpack.c.l.b16 %v256
  %v294 = vpack.c.b16 %v279, %v278
  %v295 = vpack.c.b16 %v281, %v280
  %v296 = vpack.c.b16 %v283, %v282
  %v297 = vpack.c.b16 %v285, %v284
  %v298 = vpack.c.b16 %v287, %v286
  %v299 = vpack.c.b16 %v289, %v288
  %v300 = vpack.c.b16 %v291, %v290
  %v301 = vpack.c.b16 %v293, %v292
  %310 = vmatprep.subr.bf16.mxu0 0
  %311 = vmatpush1.bf16.msra.mxu0 %v294
  %312 = vmatprep.subr.bf16.mxu0 0
  %313 = vmatpush1.bf16.msra.mxu0 %v295
  %314 = vmatprep.subr.bf16.mxu0 0
  %315 = vmatpush1.bf16.msra.mxu0 %v296
  %316 = vmatprep.subr.bf16.mxu0 0
  %317 = vmatpush1.bf16.msra.mxu0 %v297
  %318 = vmatprep.subr.bf16.mxu0 0
  %319 = vmatpush1.bf16.msra.mxu0 %v298
  %320 = vmatprep.subr.bf16.mxu0 0
  %321 = vmatpush1.bf16.msra.mxu0 %v299
  %322 = vmatprep.subr.bf16.mxu0 0
  %323 = vmatpush1.bf16.msra.mxu0 %v300
  %324 = vmatprep.subr.bf16.mxu0 0
  %325 = vmatpush1.bf16.msra.mxu0 %v301
  %326 = vmatprep.subr.bf16.mxu0 0
  %327 = vmatpush1.bf16.msra.mxu0 0
  %328 = vmatprep.subr.bf16.mxu0 0
  %329 = vmatpush1.bf16.msra.mxu0 0
  %330 = vmatprep.subr.bf16.mxu0 0
  %331 = vmatpush1.bf16.msra.mxu0 0
  %332 = vmatprep.subr.bf16.mxu0 0
  %333 = vmatpush1.bf16.msra.mxu0 0
  %334 = vmatprep.subr.bf16.mxu0 0
  %335 = vmatpush1.bf16.msra.mxu0 0
  %336 = vmatprep.subr.bf16.mxu0 0
  %337 = vmatpush1.bf16.msra.mxu0 0
  %338 = vmatprep.subr.bf16.mxu0 0
  %339 = vmatpush1.bf16.msra.mxu0 0
  %340 = vmatprep.subr.bf16.mxu0 0
  %341 = vmatpush1.bf16.msra.mxu0 0
  %342 = vmatprep.mubr.bf16.mxu0 0
  %343 = vmatmul.mubr.bf16.gmra.mrb[0].mxu0 %v240
  %v344 = vpop.f32.mrb[0].mxu0
  %v345 = vadd.f32 %v261, %v344
  %v346 = vpop.f32.mrb[0].mxu0
  %v347 = vpop.f32.mrb[0].mxu0
  %v348 = vpop.f32.mrb[0].mxu0
  %349 = vdwg.mxu0
  %350 = vst [vmem:[%s4] sm:$0xff] %v345
  // Predicated region
  $region18: #{fwd.1} parent=0 // pred_check
    _
  $region19: #{fwd.1} parent=0 // pred_check_branch
    %352 = sbr.rel (0) target = $region21
  $region20: #{fwd.1} parent=0 // pred_region
    _
  $region21: #{fwd.1} parent=0 // pred_fallthru
    _
  // Predicated region
  $region22: #{fwd.1} parent=0 // pred_check
    _
  $region23: #{fwd.1} parent=0 // pred_check_branch
    %354 = sbr.rel (0) target = $region25
  $region24: #{fwd.1} parent=0 // pred_region
    _
  $region25: #{fwd.1} parent=0 // pred_fallthru
    _

</llo_original>
